<compile_context>
chip_gen: v7x
topology: tpu7x:2x2x1
jax: 0.10.0
libtpu: 0.0.40
codegen_flags: <defaults>
</compile_context>

<pallas_src>
import functools

import jax
import jax.numpy as jnp
from jax.experimental import pallas as pl
from jax.experimental.pallas import tpu as pltpu

HIDDEN = 256


def _round_up(x, m):
    return (x + m - 1) // m * m


def _cdiv(a, b):
    return -(-a // b)


def _qnet_kernel(x_ref, w1_ref, b1_ref, w2_ref, b2_ref, w3_ref, b3_ref, o_ref):
    # fc1: single MXU pass over the packed [obs, act] activation.
    x16 = x_ref[...].astype(jnp.bfloat16)
    h1 = jnp.dot(x16, w1_ref[...], preferred_element_type=jnp.float32)
    h1 = jnp.maximum(h1 + b1_ref[...], 0.0)

    # fc2 + ReLU (bf16 operands, f32 accumulation).
    h2 = jnp.dot(h1.astype(jnp.bfloat16), w2_ref[...],
                 preferred_element_type=jnp.float32)
    h2 = jnp.maximum(h2 + b2_ref[...], 0.0)

    # fc3 has N=1: a padded MXU pass would waste a full systolic width, so do
    # it on the VPU (elementwise) + XLU (lane reduction). b3 is an SMEM scalar.
    out = jnp.sum(h2 * w3_ref[...], axis=-1, keepdims=True) + b3_ref[0, 0]
    o_ref[...] = out.astype(o_ref.dtype)


@functools.partial(jax.jit, static_argnames=("block_m",))
def soft_q_forward(obs, act, params, *, block_m=1024):
    """obs: (B, obs_dim) f32, act: (B, act_dim) f32 -> (B, 1) f32."""
    w1, b1, w2, b2, w3, b3 = params
    B, obs_dim = obs.shape
    act_dim = act.shape[1]
    in_dim = obs_dim + act_dim

    # Pack obs/act once (tiny array, single fused XLA op) so fc1 is one dot.
    x = jnp.concatenate([obs, act], axis=1)

    # --- Tile selection ------------------------------------------------------
    # * derive the tile from the number of tiles so padding waste is bounded
    # * force >= 2 grid steps when the batch allows (v7x megacore sharding)
    # * keep tiles a multiple of 16 (bf16 sublane packing; satisfies (8,128))
    blk = max(16, _round_up(int(block_m), 16))
    n_tiles = _cdiv(B, blk)
    if n_tiles < 2 and B >= 32:
        n_tiles = 2
    tm = _round_up(_cdiv(B, n_tiles), 16)
    b_pad = tm * n_tiles
    if b_pad != B:  # static decision; no-op for already-aligned batches
        x = jnp.pad(x, ((0, b_pad - B), (0, 0)))

    def resident(shape):
        # Weights/biases: same block every grid step -> stay VMEM-resident.
        return pl.BlockSpec(shape, lambda i: (0, 0))

    cost = pl.CostEstimate(
        flops=2 * b_pad * HIDDEN * (in_dim + HIDDEN + 1),
        transcendentals=0,
        bytes_accessed=(b_pad * in_dim * 4 + b_pad * 4          # activations in/out
                        + (in_dim + HIDDEN) * HIDDEN * 2        # bf16 matmul weights
                        + 3 * HIDDEN * 4 + 4),                  # biases + fc3 row
    )

    out = pl.pallas_call(
        _qnet_kernel,
        out_shape=jax.ShapeDtypeStruct((b_pad, 1), jnp.float32),
        grid=(n_tiles,),
        in_specs=[
            pl.BlockSpec((tm, in_dim), lambda i: (i, 0)),     # packed [obs, act] tile
            resident((in_dim, HIDDEN)),                       # w1 (bf16)
            resident((1, HIDDEN)),                            # b1 (f32)
            resident((HIDDEN, HIDDEN)),                       # w2 (bf16)
            resident((1, HIDDEN)),                            # b2 (f32)
            resident((1, HIDDEN)),                            # w3 row (f32)
            pl.BlockSpec((1, 1), lambda i: (0, 0),            # b3 scalar in SMEM
                         memory_space=pltpu.MemorySpace.SMEM),
        ],
        out_specs=pl.BlockSpec((tm, 1), lambda i: (i, 0)),
        compiler_params=pltpu.CompilerParams(
            dimension_semantics=("parallel",)),
        cost_estimate=cost,
    )(x, w1, b1, w2, b2, w3, b3)
    return out[:B]


def init_params(key, obs_dim, act_dim):
    """Deterministic init mirroring torch.nn.Linear (uniform +/- 1/sqrt(fan_in))."""
    in_dim = obs_dim + act_dim

    def linear(key, fan_in, fan_out):
        kw, kb = jax.random.split(key)
        bound = 1.0 / jnp.sqrt(float(fan_in))
        w = jax.random.uniform(kw, (fan_in, fan_out), jnp.float32, -bound, bound)
        b = jax.random.uniform(kb, (1, fan_out), jnp.float32, -bound, bound)
        return w, b

    k1, k2, k3 = jax.random.split(key, 3)
    w1, b1 = linear(k1, in_dim, HIDDEN)
    w2, b2 = linear(k2, HIDDEN, HIDDEN)
    w3, b3 = linear(k3, HIDDEN, 1)

    # Kernel layout: matmul weights stored bf16 (MXU-native), fc3 weight kept
    # as a (1, HIDDEN) f32 row for the VPU dot, b3 as a (1, 1) SMEM scalar.
    return (
        w1.astype(jnp.bfloat16),
        b1,
        w2.astype(jnp.bfloat16),
        b2,
        w3.T.reshape(1, HIDDEN),
        b3.reshape(1, 1),
    )


def reference_forward(obs, act, params):
    """Pure-JAX reference mirroring the kernel's bf16-operand / f32-accum math."""
    w1, b1, w2, b2, w3, b3 = params
    x = jnp.concatenate([obs, act], axis=1).astype(jnp.bfloat16)
    h1 = jnp.dot(x, w1, preferred_element_type=jnp.float32)
    h1 = jnp.maximum(h1 + b1, 0.0)
    h2 = jnp.dot(h1.astype(jnp.bfloat16), w2, preferred_element_type=jnp.float32)
    h2 = jnp.maximum(h2 + b2, 0.0)
    return jnp.sum(h2 * w3, axis=-1, keepdims=True) + b3


def reference_forward_f32(obs, act, params):
    """Full-f32 reference matching the original torch forward (concat form)."""
    w1, b1, w2, b2, w3, b3 = params
    x = jnp.concatenate([obs, act], axis=1)
    x = jnp.maximum(x @ w1.astype(jnp.float32) + b1, 0.0)
    x = jnp.maximum(x @ w2.astype(jnp.float32) + b2, 0.0)
    return x @ w3.T + b3


if __name__ == "__main__":
    # Small shapes consistent with a flat-observation / continuous-action env.
    B, OBS_DIM, ACT_DIM = 8, 16, 8

    key = jax.random.PRNGKey(0)
    k_obs, k_act, k_param = jax.random.split(key, 3)
    obs = jax.random.normal(k_obs, (B, OBS_DIM), jnp.float32)
    act = jax.random.normal(k_act, (B, ACT_DIM), jnp.float32)
    params = init_params(k_param, OBS_DIM, ACT_DIM)

    q = jax.block_until_ready(soft_q_forward(obs, act, params))
    assert q.shape == (B, 1)

    # Exact-path check (same bf16-operand / f32-accum math as the kernel).
    q_ref = reference_forward(obs, act, params)
    assert jnp.allclose(q, q_ref, atol=1e-3, rtol=1e-3), "mismatch vs bf16 reference"

    # Fidelity check vs. the original f32 module semantics (bf16 operand rounding).
    q_f32 = reference_forward_f32(obs, act, params)
    assert jnp.allclose(q, q_f32, atol=3e-2, rtol=3e-2), "mismatch vs f32 reference"

    # Exercise the multi-tile / megacore path (grid >= 2, padded batch).
    B2 = 600
    obs2 = jax.random.normal(k_obs, (B2, OBS_DIM), jnp.float32)
    act2 = jax.random.normal(k_act, (B2, ACT_DIM), jnp.float32)
    q2 = jax.block_until_ready(soft_q_forward(obs2, act2, params))
    assert q2.shape == (B2, 1)
    assert jnp.allclose(q2, reference_forward(obs2, act2, params),
                        atol=1e-3, rtol=1e-3), "mismatch vs bf16 reference (B=600)"

    print("KERNEL_OK")
</pallas_src>

<mosaic_0001>
module attributes {stable_mosaic.version = 11 : i64} {
  func.func @_qnet_kernel(%arg0: i32, %arg1: memref<16x24xf32, #tpu.memory_space<vmem>>, %arg2: memref<24x256xbf16, #tpu.memory_space<vmem>>, %arg3: memref<1x256xf32, #tpu.memory_space<vmem>>, %arg4: memref<256x256xbf16, #tpu.memory_space<vmem>>, %arg5: memref<1x256xf32, #tpu.memory_space<vmem>>, %arg6: memref<1x256xf32, #tpu.memory_space<vmem>>, %arg7: memref<1x1xf32, #tpu.memory_space<smem>>, %arg8: memref<16x1xf32, #tpu.memory_space<vmem>>) attributes {dimension_semantics = [#tpu.dimension_semantics<parallel>], iteration_bounds = array<i64: 1>, scalar_prefetch = 0 : i64, scratch_operands = 0 : i64, tpu.core_type = #tpu.core_type<tc>, window_params = [{transform_indices = @transform_0, window_bounds = array<i64: 16, 24>}, {pipeline_mode = #tpu.pipeline_mode<synchronous>, transform_indices = @transform_1, window_bounds = array<i64: 24, 256>}, {pipeline_mode = #tpu.pipeline_mode<synchronous>, transform_indices = @transform_2, window_bounds = array<i64: 1, 256>}, {pipeline_mode = #tpu.pipeline_mode<synchronous>, transform_indices = @transform_3, window_bounds = array<i64: 256, 256>}, {pipeline_mode = #tpu.pipeline_mode<synchronous>, transform_indices = @transform_4, window_bounds = array<i64: 1, 256>}, {pipeline_mode = #tpu.pipeline_mode<synchronous>, transform_indices = @transform_5, window_bounds = array<i64: 1, 256>}, {transform_indices = @transform_6, window_bounds = array<i64: 1, 1>}, {transform_indices = @transform_7, window_bounds = array<i64: 16, 1>}]} {
    %c0 = arith.constant 0 : index
    %c0_0 = arith.constant 0 : index
    %0 = vector.load %arg1[%c0, %c0_0] : memref<16x24xf32, #tpu.memory_space<vmem>>, vector<16x24xf32>
    %1 = arith.truncf %0 : vector<16x24xf32> to vector<16x24xbf16>
    %c0_1 = arith.constant 0 : index
    %c0_2 = arith.constant 0 : index
    %2 = vector.load %arg2[%c0_1, %c0_2] : memref<24x256xbf16, #tpu.memory_space<vmem>>, vector<24x256xbf16>
    %cst = arith.constant dense<0.000000e+00> : vector<16x256xf32>
    %3 = tpu.matmul %1, %2, %cst {dimension_numbers = #tpu.dot_dimension_numbers<[1], [0], [0], [1], [0, 0, 1, 1], [], []>} : vector<16x24xbf16>, vector<24x256xbf16>, vector<16x256xf32> -> vector<16x256xf32>
    %c0_3 = arith.constant 0 : index
    %c0_4 = arith.constant 0 : index
    %4 = vector.load %arg3[%c0_3, %c0_4] : memref<1x256xf32, #tpu.memory_space<vmem>>, vector<1x256xf32>
    %5 = vector.broadcast %4 : vector<1x256xf32> to vector<16x256xf32>
    %6 = arith.addf %3, %5 : vector<16x256xf32>
    %cst_5 = arith.constant 0.000000e+00 : f32
    %7 = vector.broadcast %cst_5 : f32 to vector<16x256xf32>
    %8 = arith.maximumf %6, %7 : vector<16x256xf32>
    %9 = arith.truncf %8 : vector<16x256xf32> to vector<16x256xbf16>
    %c0_6 = arith.constant 0 : index
    %c0_7 = arith.constant 0 : index
    %10 = vector.load %arg4[%c0_6, %c0_7] : memref<256x256xbf16, #tpu.memory_space<vmem>>, vector<256x256xbf16>
    %cst_8 = arith.constant dense<0.000000e+00> : vector<16x256xf32>
    %11 = tpu.matmul %9, %10, %cst_8 {dimension_numbers = #tpu.dot_dimension_numbers<[1], [0], [0], [1], [0, 0, 1, 1], [], []>} : vector<16x256xbf16>, vector<256x256xbf16>, vector<16x256xf32> -> vector<16x256xf32>
    %c0_9 = arith.constant 0 : index
    %c0_10 = arith.constant 0 : index
    %12 = vector.load %arg5[%c0_9, %c0_10] : memref<1x256xf32, #tpu.memory_space<vmem>>, vector<1x256xf32>
    %13 = vector.broadcast %12 : vector<1x256xf32> to vector<16x256xf32>
    %14 = arith.addf %11, %13 : vector<16x256xf32>
    %cst_11 = arith.constant 0.000000e+00 : f32
    %15 = vector.broadcast %cst_11 : f32 to vector<16x256xf32>
    %16 = arith.maximumf %14, %15 : vector<16x256xf32>
    %c0_12 = arith.constant 0 : index
    %c0_13 = arith.constant 0 : index
    %17 = vector.load %arg6[%c0_12, %c0_13] : memref<1x256xf32, #tpu.memory_space<vmem>>, vector<1x256xf32>
    %18 = vector.broadcast %17 : vector<1x256xf32> to vector<16x256xf32>
    %19 = arith.mulf %16, %18 : vector<16x256xf32>
    %cst_14 = arith.constant dense<0.000000e+00> : vector<16xf32>
    %20 = vector.multi_reduction <add>, %19, %cst_14 [1] : vector<16x256xf32> to vector<16xf32>
    %21 = vector.shape_cast %20 : vector<16xf32> to vector<16x1xf32>
    %c0_15 = arith.constant 0 : index
    %c0_16 = arith.constant 0 : index
    %22 = memref.load %arg7[%c0_15, %c0_16] : memref<1x1xf32, #tpu.memory_space<smem>>
    %23 = vector.broadcast %22 : f32 to vector<16x1xf32>
    %24 = arith.addf %21, %23 : vector<16x1xf32>
    %c0_17 = arith.constant 0 : index
    %c0_18 = arith.constant 0 : index
    %25 = vector.load %arg8[%c0_17, %c0_18] : memref<16x1xf32, #tpu.memory_space<vmem>>, vector<16x1xf32>
    tpu.vector_store %arg8[%c0_17, %c0_18], %24 {strides = array<i32>} : memref<16x1xf32, #tpu.memory_space<vmem>>, vector<16x1xf32>,
    return
  }
  func.func @transform_0(%arg0: i32) -> (i32, i32) {
    %c0_i32 = arith.constant 0 : i32
    %c0_i32_0 = arith.constant 0 : i32
    return %arg0, %c0_i32 : i32, i32
  }
  func.func @transform_1(%arg0: i32) -> (i32, i32) {
    %c0_i32 = arith.constant 0 : i32
    %c0_i32_0 = arith.constant 0 : i32
    %c0_i32_1 = arith.constant 0 : i32
    return %c0_i32, %c0_i32_0 : i32, i32
  }
  func.func @transform_2(%arg0: i32) -> (i32, i32) {
    %c0_i32 = arith.constant 0 : i32
    %c0_i32_0 = arith.constant 0 : i32
    %c0_i32_1 = arith.constant 0 : i32
    return %c0_i32, %c0_i32_0 : i32, i32
  }
  func.func @transform_3(%arg0: i32) -> (i32, i32) {
    %c0_i32 = arith.constant 0 : i32
    %c0_i32_0 = arith.constant 0 : i32
    %c0_i32_1 = arith.constant 0 : i32
    return %c0_i32, %c0_i32_0 : i32, i32
  }
  func.func @transform_4(%arg0: i32) -> (i32, i32) {
    %c0_i32 = arith.constant 0 : i32
    %c0_i32_0 = arith.constant 0 : i32
    %c0_i32_1 = arith.constant 0 : i32
    return %c0_i32, %c0_i32_0 : i32, i32
  }
  func.func @transform_5(%arg0: i32) -> (i32, i32) {
    %c0_i32 = arith.constant 0 : i32
    %c0_i32_0 = arith.constant 0 : i32
    %c0_i32_1 = arith.constant 0 : i32
    return %c0_i32, %c0_i32_0 : i32, i32
  }
  func.func @transform_6(%arg0: i32) -> (i32, i32) {
    %c0_i32 = arith.constant 0 : i32
    %c0_i32_0 = arith.constant 0 : i32
    %c0_i32_1 = arith.constant 0 : i32
    return %c0_i32, %c0_i32_0 : i32, i32
  }
  func.func @transform_7(%arg0: i32) -> (i32, i32) {
    %c0_i32 = arith.constant 0 : i32
    %c0_i32_0 = arith.constant 0 : i32
    return %arg0, %c0_i32 : i32, i32
  }
}

</mosaic_0001>

<llo_original>
// kernel: soft_q_forward.1
$region0: #{soft_q_forward.1}
  #allocation0 [shape = 'u32[]', space=smem, size = 0x4, offset = 0x4, fixed_abs, tag = 'smem constant byte address 0x4 - core index']
  #allocation1 [shape = 'u32[144,128]{1,0:T(1,128)}', space=vmem, size = 0x12000, scoped, tag = 'internal scratch']
  #allocation2 [shape = 'f32[1,1]{1,0:T(1,128)S(6)}', space=smem, size = 0x200, scoped, tag = 'scoped memory for soft_q_forward.1']
  %s0 = inlined_call_operand.vmem [shape: f32[16,24], index: 0, kind: input, shape index: {}]
  %s1 = inlined_call_operand.vmem [shape: bf16[24,256], index: 1, kind: input, shape index: {}]
  %s2 = inlined_call_operand.vmem [shape: f32[1,256], index: 2, kind: input, shape index: {}]
  %s3 = inlined_call_operand.hbm [shape: bf16[256,256], index: 3, kind: input, shape index: {}]
  %s4 = inlined_call_operand.vmem [shape: f32[1,256], index: 4, kind: input, shape index: {}]
  %s5 = inlined_call_operand.vmem [shape: f32[1,256], index: 5, kind: input, shape index: {}]
  %s6 = inlined_call_operand.<no memory space> [shape: f32[1,1], index: 6, kind: input, shape index: {}]
  %s7 = inlined_call_operand.vmem [shape: f32[16,1], index: 7, kind: output, shape index: {}]
  %s8 = sld [smem:[#allocation0]]
  $region42: #{soft_q_forward.1} parent=0
    _
  %s10 = ssub.s32 1, %s8
  %s11 = scalar_select 0, %s10, %s8
  %12 = sst [smem:[#allocation2]] %s6
  $region1: #{soft_q_forward.1} parent=0
    #allocation3 [shape = 'u8[131072]{0}', space=vmem, size = 0x20000, scoped, tag = 'input window, operand 3, single buffered']
    #allocation4 [shape = 's32[1]{0}', space=sflag, size = 0x4, scoped, tag = 'scoped memory for soft_q_forward.1']
    %13 = vsyncpa [#allocation4], 0
    // Predicated region
    $region2: #{soft_q_forward.1} parent=1 // pred_check
      _
    $region3: #{soft_q_forward.1} parent=1 // pred_check_branch
      %15 = sbr.rel (0) target = $region5
    $region4: #{soft_q_forward.1} parent=1 // pred_region
      _
    $region5: #{soft_q_forward.1} parent=1 // pred_fallthru
      _
    // Predicated region
    $region6: #{soft_q_forward.1} parent=1 // pred_check
      _
    $region7: #{soft_q_forward.1} parent=1 // pred_check_branch
      %17 = sbr.rel (0) target = $region9
    $region8: #{soft_q_forward.1} parent=1 // pred_region
      _
    $region9: #{soft_q_forward.1} parent=1 // pred_fallthru
      _
    // Predicated region
    $region10: #{soft_q_forward.1} parent=1 // pred_check
      _
    $region11: #{soft_q_forward.1} parent=1 // pred_check_branch
      %19 = sbr.rel (0) target = $region13
    $region12: #{soft_q_forward.1} parent=1 // pred_region
      _
    $region13: #{soft_q_forward.1} parent=1 // pred_fallthru
      _
    // Predicated region
    $region14: #{soft_q_forward.1} parent=1 // pred_check
      _
    $region15: #{soft_q_forward.1} parent=1 // pred_check_branch
      %21 = sbr.rel (0) target = $region17
    $region16: #{soft_q_forward.1} parent=1 // pred_region
      %s23 = ssub.s32 4096, 4096
      %24 = vsyncadd [#allocation4], %s23
      %s25 = sshll.u32 [#allocation3], 4
      %s26 = int_to_ptr.vmem [resolvable:$true] %s25
      %31 = dma.hbm_to_vmem [thread:$0]  %s3, 4096, %s26, [#allocation4], 128, 128, 8
    $region17: #{soft_q_forward.1} parent=1 // pred_fallthru
      _
    // Predicated region
    $region18: #{soft_q_forward.1} parent=1 // pred_check
      _
    $region19: #{soft_q_forward.1} parent=1 // pred_check_branch
      %33 = sbr.rel (0) target = $region21
    $region20: #{soft_q_forward.1} parent=1 // pred_region
      _
    $region21: #{soft_q_forward.1} parent=1 // pred_fallthru
      _
    // Predicated region
    $region22: #{soft_q_forward.1} parent=1 // pred_check
      _
    $region23: #{soft_q_forward.1} parent=1 // pred_check_branch
      %35 = sbr.rel (0) target = $region25
    $region24: #{soft_q_forward.1} parent=1 // pred_region
      _
    $region25: #{soft_q_forward.1} parent=1 // pred_fallthru
      _
    // Predicated region
    $region26: #{soft_q_forward.1} parent=1 // pred_check
      _
    $region27: #{soft_q_forward.1} parent=1 // pred_check_branch
      %37 = sbr.rel (0) target = $region29
    $region28: #{soft_q_forward.1} parent=1 // pred_region
      _
    $region29: #{soft_q_forward.1} parent=1 // pred_fallthru
      _
    // Predicated region
    $region30: #{soft_q_forward.1} parent=1 // pred_check
      _
    $region31: #{soft_q_forward.1} parent=1 // pred_check_branch
      %39 = sbr.rel (0) target = $region33
    $region32: #{soft_q_forward.1} parent=1 // pred_region
      %40 = dma.done [#allocation4], 4096
    $region33: #{soft_q_forward.1} parent=1 // pred_fallthru
      _
    %v42 = vld [vmem:[%s0] sm:$0xff]
    %v43 = vld [vmem:[%s0 + $0x8] sm:$0xff]
    %v44 = vpack.c.bf16 %v43, %v42
    %v45 = vld [vmem:[%s1] sm:$0xff]
    %v46 = vld [vmem:[%s1 + $0x8] sm:$0xff]
    %v47 = vld [vmem:[%s1 + $0x10] sm:$0xff]
    %v48 = vld [vmem:[%s2] sm:$0x3]
    %v50 = vlaneseq
    %v51 = vshrl.u32 %v50, 7
    %v52 = vsub.s32 0, %v51
    %v53 = vrot.slane %v48, %v52
    %v54 = vlaneseq
    %v55 = vshrl.u32 %v54, 7
    %v56 = vsub.s32 1, %v55
    %v57 = vrot.slane %v48, %v56
    %v63 = vunpack.c.l.b16 %v45
    %v64 = vunpack.c.h.b16 %v45
    %v65 = vunpack.c.l.b16 %v46
    %v66 = vunpack.c.h.b16 %v46
    %v67 = vunpack.c.l.b16 %v47
    %v68 = vunpack.c.h.b16 %v47
    %v69 = vpack.c.b16 %v65, %v63
    %v70 = vpack.c.b16 %v66, %v64
    %v71 = vpack.c.b16 %v67, %v67
    %v72 = vpack.c.b16 %v68, %v68
    %vm75 = vcmask 195584
    %v77 = vsel %vm75, %v44, 0
    %vm79 = vcmask 1043456
    %v81 = vsel %vm79, %v71, 0
    %v84 = vsel %vm79, %v72, 0
    %86 = vmatprep.subr.bf16.mxu0 %v70
    %87 = vmatpush1.bf16.msra.mxu0 %v69
    %88 = vmatprep.subr.bf16.mxu0 %v84
    %89 = vmatpush1.bf16.msra.mxu0 %v81
    %90 = vmatprep.subr.bf16.mxu0 0
    %91 = vmatpush1.bf16.msra.mxu0 0
    %92 = vmatprep.subr.bf16.mxu0 0
    %93 = vmatpush1.bf16.msra.mxu0 0
    %94 = vmatprep.subr.bf16.mxu0 0
    %95 = vmatpush1.bf16.msra.mxu0 0
    %96 = vmatprep.subr.bf16.mxu0 0
    %97 = vmatpush1.bf16.msra.mxu0 0
    %98 = vmatprep.subr.bf16.mxu0 0
    %99 = vmatpush1.bf16.msra.mxu0 0
    %100 = vmatprep.subr.bf16.mxu0 0
    %101 = vmatpush1.bf16.msra.mxu0 0
    %102 = vmatprep.subr.bf16.mxu0 0
    %103 = vmatpush1.bf16.msra.mxu0 0
    %104 = vmatprep.subr.bf16.mxu0 0
    %105 = vmatpush1.bf16.msra.mxu0 0
    %106 = vmatprep.subr.bf16.mxu0 0
    %107 = vmatpush1.bf16.msra.mxu0 0
    %108 = vmatprep.subr.bf16.mxu0 0
    %109 = vmatpush1.bf16.msra.mxu0 0
    %110 = vmatprep.subr.bf16.mxu0 0
    %111 = vmatpush1.bf16.msra.mxu0 0
    %112 = vmatprep.subr.bf16.mxu0 0
    %113 = vmatpush1.bf16.msra.mxu0 0
    %114 = vmatprep.subr.bf16.mxu0 0
    %115 = vmatpush1.bf16.msra.mxu0 0
    %116 = vmatprep.subr.bf16.mxu0 0
    %117 = vmatpush1.bf16.msra.mxu0 0
    %118 = vmatprep.mubr.bf16.mxu0 0
    %119 = vmatmul.mubr.bf16.gmra.mrb[0].mxu0 %v77
    %v120 = vpop.f32.mrb[0].mxu0
    %v121 = vadd.f32 %v53, %v120
    %v122 = vpop.f32.mrb[0].mxu0
    %v123 = vadd.f32 %v57, %v122
    %v124 = vpop.f32.mrb[0].mxu0
    %v125 = vadd.f32 %v53, %v124
    %v126 = vpop.f32.mrb[0].mxu0
    %v127 = vadd.f32 %v57, %v126
    %128 = vdwg.mxu0
    %v129 = vmax.f32 %v121, 0.0
    %v130 = vmax.f32 %v123, 0.0
    %v131 = vmax.f32 %v125, 0.0
    %v132 = vmax.f32 %v127, 0.0
    %v133 = vpack.c.bf16 %v131, %v129
    %v134 = vpack.c.bf16 %v132, %v130
    %v135 = vld [vmem:[#allocation3] sm:$0xff]
    %v136 = vld [vmem:[#allocation3 + $0x8] sm:$0xff]
    %v137 = vld [vmem:[#allocation3 + $0x10] sm:$0xff]
    %v138 = vld [vmem:[#allocation3 + $0x18] sm:$0xff]
    %v139 = vld [vmem:[#allocation3 + $0x20] sm:$0xff]
    %v140 = vld [vmem:[#allocation3 + $0x28] sm:$0xff]
    %v141 = vld [vmem:[#allocation3 + $0x30] sm:$0xff]
    %v142 = vld [vmem:[#allocation3 + $0x38] sm:$0xff]
    %v143 = vld [vmem:[#allocation3 + $0x40] sm:$0xff]
    %v144 = vld [vmem:[#allocation3 + $0x48] sm:$0xff]
    %v145 = vld [vmem:[#allocation3 + $0x50] sm:$0xff]
    %v146 = vld [vmem:[#allocation3 + $0x58] sm:$0xff]
    %v147 = vld [vmem:[#allocation3 + $0x60] sm:$0xff]
    %v148 = vld [vmem:[#allocation3 + $0x68] sm:$0xff]
    %v149 = vld [vmem:[#allocation3 + $0x70] sm:$0xff]
    %v150 = vld [vmem:[#allocation3 + $0x78] sm:$0xff]
    %v151 = vld [vmem:[#allocation3 + $0x80] sm:$0xff]
    %v152 = vld [vmem:[#allocation3 + $0x88] sm:$0xff]
    %v153 = vld [vmem:[#allocation3 + $0x90] sm:$0xff]
    %v154 = vld [vmem:[#allocation3 + $0x98] sm:$0xff]
    %v155 = vld [vmem:[#allocation3 + $0xa0] sm:$0xff]
    %v156 = vld [vmem:[#allocation3 + $0xa8] sm:$0xff]
    %v157 = vld [vmem:[#allocation3 + $0xb0] sm:$0xff]
    %v158 = vld [vmem:[#allocation3 + $0xb8] sm:$0xff]
    %v159 = vld [vmem:[#allocation3 + $0xc0] sm:$0xff]
    %v160 = vld [vmem:[#allocation3 + $0xc8] sm:$0xff]
    %v161 = vld [vmem:[#allocation3 + $0xd0] sm:$0xff]
    %v162 = vld [vmem:[#allocation3 + $0xd8] sm:$0xff]
    %v163 = vld [vmem:[#allocation3 + $0xe0] sm:$0xff]
    %v164 = vld [vmem:[#allocation3 + $0xe8] sm:$0xff]
    %v165 = vld [vmem:[#allocation3 + $0xf0] sm:$0xff]
    %v166 = vld [vmem:[#allocation3 + $0xf8] sm:$0xff]
    %v167 = vld [vmem:[%s4] sm:$0x3]
    %v169 = vlaneseq
    %v170 = vshrl.u32 %v169, 7
    %v171 = vsub.s32 0, %v170
    %v172 = vrot.slane %v167, %v171
    %v173 = vlaneseq
    %v174 = vshrl.u32 %v173, 7
    %v175 = vsub.s32 1, %v174
    %v176 = vrot.slane %v167, %v175
    %v211 = vunpack.c.l.b16 %v135
    %v212 = vunpack.c.h.b16 %v135
    %v213 = vunpack.c.l.b16 %v136
    %v214 = vunpack.c.h.b16 %v136
    %v215 = vunpack.c.l.b16 %v137
    %v216 = vunpack.c.h.b16 %v137
    %v217 = vunpack.c.l.b16 %v138
    %v218 = vunpack.c.h.b16 %v138
    %v219 = vunpack.c.l.b16 %v139
    %v220 = vunpack.c.h.b16 %v139
    %v221 = vunpack.c.l.b16 %v140
    %v222 = vunpack.c.h.b16 %v140
    %v223 = vunpack.c.l.b16 %v141
    %v224 = vunpack.c.h.b16 %v141
    %v225 = vunpack.c.l.b16 %v142
    %v226 = vunpack.c.h.b16 %v142
    %v227 = vunpack.c.l.b16 %v143
    %v228 = vunpack.c.h.b16 %v143
    %v229 = vunpack.c.l.b16 %v144
    %v230 = vunpack.c.h.b16 %v144
    %v231 = vunpack.c.l.b16 %v145
    %v232 = vunpack.c.h.b16 %v145
    %v233 = vunpack.c.l.b16 %v146
    %v234 = vunpack.c.h.b16 %v146
    %v235 = vunpack.c.l.b16 %v147
    %v236 = vunpack.c.h.b16 %v147
    %v237 = vunpack.c.l.b16 %v148
    %v238 = vunpack.c.h.b16 %v148
    %v239 = vunpack.c.l.b16 %v149
    %v240 = vunpack.c.h.b16 %v149
    %v241 = vunpack.c.l.b16 %v150
    %v242 = vunpack.c.h.b16 %v150
    %v243 = vunpack.c.l.b16 %v151
    %v244 = vunpack.c.h.b16 %v151
    %v245 = vunpack.c.l.b16 %v152
    %v246 = vunpack.c.h.b16 %v152
    %v247 = vunpack.c.l.b16 %v153
    %v248 = vunpack.c.h.b16 %v153
    %v249 = vunpack.c.l.b16 %v154
    %v250 = vunpack.c.h.b16 %v154
    %v251 = vunpack.c.l.b16 %v155
    %v252 = vunpack.c.h.b16 %v155
    %v253 = vunpack.c.l.b16 %v156
    %v254 = vunpack.c.h.b16 %v156
    %v255 = vunpack.c.l.b16 %v157
    %v256 = vunpack.c.h.b16 %v157
    %v257 = vunpack.c.l.b16 %v158
    %v258 = vunpack.c.h.b16 %v158
    %v259 = vunpack.c.l.b16 %v159
    %v260 = vunpack.c.h.b16 %v159
    %v261 = vunpack.c.l.b16 %v160
    %v262 = vunpack.c.h.b16 %v160
    %v263 = vunpack.c.l.b16 %v161
    %v264 = vunpack.c.h.b16 %v161
    %v265 = vunpack.c.l.b16 %v162
    %v266 = vunpack.c.h.b16 %v162
    %v267 = vunpack.c.l.b16 %v163
    %v268 = vunpack.c.h.b16 %v163
    %v269 = vunpack.c.l.b16 %v164
    %v270 = vunpack.c.h.b16 %v164
    %v271 = vunpack.c.l.b16 %v165
    %v272 = vunpack.c.h.b16 %v165
    %v273 = vunpack.c.l.b16 %v166
    %v274 = vunpack.c.h.b16 %v166
    %v275 = vpack.c.b16 %v213, %v211
    %v276 = vpack.c.b16 %v214, %v212
    %v277 = vpack.c.b16 %v217, %v215
    %v278 = vpack.c.b16 %v218, %v216
    %v279 = vpack.c.b16 %v221, %v219
    %v280 = vpack.c.b16 %v222, %v220
    %v281 = vpack.c.b16 %v225, %v223
    %v282 = vpack.c.b16 %v226, %v224
    %v283 = vpack.c.b16 %v229, %v227
    %v284 = vpack.c.b16 %v230, %v228
    %v285 = vpack.c.b16 %v233, %v231
    %v286 = vpack.c.b16 %v234, %v232
    %v287 = vpack.c.b16 %v237, %v235
    %v288 = vpack.c.b16 %v238, %v236
    %v289 = vpack.c.b16 %v241, %v239
    %v290 = vpack.c.b16 %v242, %v240
    %v291 = vpack.c.b16 %v245, %v243
    %v292 = vpack.c.b16 %v246, %v244
    %v293 = vpack.c.b16 %v249, %v247
    %v294 = vpack.c.b16 %v250, %v248
    %v295 = vpack.c.b16 %v253, %v251
    %v296 = vpack.c.b16 %v254, %v252
    %v297 = vpack.c.b16 %v257, %v255
    %v298 = vpack.c.b16 %v258, %v256
    %v299 = vpack.c.b16 %v261, %v259
    %v300 = vpack.c.b16 %v262, %v260
    %v301 = vpack.c.b16 %v265, %v263
    %v302 = vpack.c.b16 %v266, %v264
    %v303 = vpack.c.b16 %v269, %v267
    %v304 = vpack.c.b16 %v270, %v268
    %v305 = vpack.c.b16 %v273, %v271
    %v306 = vpack.c.b16 %v274, %v272
    %339 = vmatprep.subr.bf16.mxu0 %v276
    %340 = vmatpush1.bf16.msra.mxu0 %v275
    %341 = vmatprep.subr.bf16.mxu0 %v278
    %342 = vmatpush1.bf16.msra.mxu0 %v277
    %343 = vmatprep.subr.bf16.mxu0 %v280
    %344 = vmatpush1.bf16.msra.mxu0 %v279
    %345 = vmatprep.subr.bf16.mxu0 %v282
    %346 = vmatpush1.bf16.msra.mxu0 %v281
    %347 = vmatprep.subr.bf16.mxu0 %v284
    %348 = vmatpush1.bf16.msra.mxu0 %v283
    %349 = vmatprep.subr.bf16.mxu0 %v286
    %350 = vmatpush1.bf16.msra.mxu0 %v285
    %351 = vmatprep.subr.bf16.mxu0 %v288
    %352 = vmatpush1.bf16.msra.mxu0 %v287
    %353 = vmatprep.subr.bf16.mxu0 %v290
    %354 = vmatpush1.bf16.msra.mxu0 %v289
    %355 = vmatprep.subr.bf16.mxu0 %v292
    %356 = vmatpush1.bf16.msra.mxu0 %v291
    %357 = vmatprep.subr.bf16.mxu0 %v294
    %358 = vmatpush1.bf16.msra.mxu0 %v293
    %359 = vmatprep.subr.bf16.mxu0 %v296
    %360 = vmatpush1.bf16.msra.mxu0 %v295
    %361 = vmatprep.subr.bf16.mxu0 %v298
    %362 = vmatpush1.bf16.msra.mxu0 %v297
    %363 = vmatprep.subr.bf16.mxu0 %v300
    %364 = vmatpush1.bf16.msra.mxu0 %v299
    %365 = vmatprep.subr.bf16.mxu0 %v302
    %366 = vmatpush1.bf16.msra.mxu0 %v301
    %367 = vmatprep.subr.bf16.mxu0 %v304
    %368 = vmatpush1.bf16.msra.mxu0 %v303
    %369 = vmatprep.subr.bf16.mxu0 %v306
    %370 = vmatpush1.bf16.msra.mxu0 %v305
    %371 = vmatprep.mubr.bf16.mxu0 %v134
    %372 = vmatmul.mubr.bf16.gmra.mrb[0].mxu0 %v133
    %v373 = vpop.f32.mrb[0].mxu0
    %v374 = vadd.f32 %v172, %v373
    %v375 = vpop.f32.mrb[0].mxu0
    %v376 = vadd.f32 %v176, %v375
    %v377 = vpop.f32.mrb[0].mxu0
    %v378 = vadd.f32 %v172, %v377
    %v379 = vpop.f32.mrb[0].mxu0
    %v380 = vadd.f32 %v176, %v379
    %381 = vdwg.mxu0
    %v382 = vmax.f32 %v374, 0.0
    %v383 = vmax.f32 %v376, 0.0
    %v384 = vmax.f32 %v378, 0.0
    %v385 = vmax.f32 %v380, 0.0
    %v386 = vld [vmem:[%s5] sm:$0x3]
    %v388 = vlaneseq
    %v389 = vshrl.u32 %v388, 7
    %v390 = vsub.s32 0, %v389
    %v391 = vrot.slane %v386, %v390
    %v392 = vlaneseq
    %v393 = vshrl.u32 %v392, 7
    %v394 = vsub.s32 1, %v393
    %v395 = vrot.slane %v386, %v394
    %v398 = vmul.f32 %v382, %v391
    %v399 = vmul.f32 %v383, %v395
    %v400 = vmul.f32 %v384, %v391
    %v401 = vmul.f32 %v385, %v395
    %v402 = vadd.f32 %v398, %v399
    %403 = vadd.xlane.f32.xlu0 %v402
    %v404 = vpop.xlane.xlu0 %403
    %v405 = vadd.f32 %v400, %v401
    %406 = vadd.xlane.f32.xlu0 %v405
    %v407 = vpop.xlane.xlu0 %406
    %s408 = sld [smem:[#allocation2]]
    %v409 = vstv %s408
    %v410 = vadd.f32 %v404, %v409
    %v411 = vadd.f32 %v407, %v409
    %vm412 = vcmask 7168
    %413 = vst.msk [vmem:[%s7] sm:$0xff] %vm412, %v410
    %414 = vst.msk [vmem:[%s7 + $0x8] sm:$0xff] %vm412, %v411
    // Predicated region
    $region34: #{soft_q_forward.1} parent=1 // pred_check
      _
    $region35: #{soft_q_forward.1} parent=1 // pred_check_branch
      %416 = sbr.rel (0) target = $region37
    $region36: #{soft_q_forward.1} parent=1 // pred_region
      _
    $region37: #{soft_q_forward.1} parent=1 // pred_fallthru
      _
    // Predicated region
    $region38: #{soft_q_forward.1} parent=1 // pred_check
      _
    $region39: #{soft_q_forward.1} parent=1 // pred_check_branch
      %418 = sbr.rel (0) target = $region41
    $region40: #{soft_q_forward.1} parent=1 // pred_region
      _
    $region41: #{soft_q_forward.1} parent=1 // pred_fallthru
      _
    %419 = vsyncpa [#allocation4], 1

</llo_original>
